<compile_context>
chip_gen: v6e
topology: v6e:2x2x1
jax: 0.10.0
libtpu: 0.0.40
codegen_flags: <defaults>
</compile_context>

<pallas_src>
import functools

import jax
import jax.numpy as jnp
from jax.experimental import pallas as pl
from jax.experimental.pallas import tpu as pltpu

_NEG_BIG = -1e30  # "-inf" stand-in that keeps f32 math NaN-free

# Accumulator lane columns inside the single (tn, 8) scratch.
_M, _L, _SY, _SYX = 0, 1, 2, 3


# ------------------------------- kernel ------------------------------------ #

def _sce_rowloss_kernel(logits_ref, labels_ref, out_ref, acc_ref, *,
                        n_rows, n_cols, row_tile, col_tile,
                        mask_rows, mask_cols):
    """Per-row soft-label CE loss with online logsumexp over class tiles."""
    i = pl.program_id(0)              # row-tile index ("parallel")
    k = pl.program_id(1)              # class-tile index ("arbitrary", innermost)
    last_k = pl.num_programs(1) - 1

    @pl.when(k == 0)
    def _init():
        acc_ref[...] = jnp.zeros(acc_ref.shape, jnp.float32)
        acc_ref[:, _M:_M + 1] = jnp.full((row_tile, 1), _NEG_BIG, jnp.float32)

    x_raw = logits_ref[...].astype(jnp.float32)   # (row_tile, col_tile)
    y_raw = labels_ref[...].astype(jnp.float32)   # (row_tile, col_tile)

    def accumulate(x, y):
        # Online logsumexp update (per row) + running sums for
        # loss = LSE * sum(y) - sum(y * x).
        m_prev = acc_ref[:, _M:_M + 1]
        m_new = jnp.maximum(m_prev, jnp.max(x, axis=1, keepdims=True))
        alpha = jnp.exp(m_prev - m_new)
        l_new = alpha * acc_ref[:, _L:_L + 1] + jnp.sum(
            jnp.exp(x - m_new), axis=1, keepdims=True)
        sy_new = acc_ref[:, _SY:_SY + 1] + jnp.sum(y, axis=1, keepdims=True)
        syx_new = acc_ref[:, _SYX:_SYX + 1] + jnp.sum(y * x, axis=1,
                                                      keepdims=True)
        acc_ref[:, _M:_M + 1] = m_new
        acc_ref[:, _L:_L + 1] = l_new
        acc_ref[:, _SY:_SY + 1] = sy_new
        acc_ref[:, _SYX:_SYX + 1] = syx_new

    if mask_cols:  # static flag: only when C % col_tile != 0
        # Unmasked fast path for every full class tile ...
        @pl.when(k != last_k)
        def _update_full():
            accumulate(x_raw, y_raw)

        # ... masked path only for the ragged last tile.  Mask is a cheap
        # (1, col_tile) lane iota broadcast across sublanes.
        @pl.when(k == last_k)
        def _update_masked():
            col_ids = k * col_tile + jax.lax.broadcasted_iota(
                jnp.int32, (1, col_tile), 1)
            valid = col_ids < n_cols
            accumulate(jnp.where(valid, x_raw, _NEG_BIG),
                       jnp.where(valid, y_raw, 0.0))
    else:
        accumulate(x_raw, y_raw)

    @pl.when(k == last_k)
    def _finalize():
        lse = acc_ref[:, _M:_M + 1] + jnp.log(acc_ref[:, _L:_L + 1])
        losses = lse * acc_ref[:, _SY:_SY + 1] - acc_ref[:, _SYX:_SYX + 1]
        if mask_rows:  # static flag: only when N % row_tile != 0
            row_ids = i * row_tile + jax.lax.broadcasted_iota(
                jnp.int32, (row_tile, 1), 0)
            # NOTE: must stay a select (not arithmetic masking) so garbage
            # NaNs from padding rows cannot leak into the final reduction.
            losses = jnp.where(row_ids < n_rows, losses, 0.0)
        out_ref[...] = losses


# ---------------------------- tile selection -------------------------------- #

def _round_up(x, m):
    return ((x + m - 1) // m) * m


def _vmem_capacity_bytes():
    try:
        return int(pltpu.get_tpu_info().vmem_capacity_bytes)
    except Exception:
        return 64 * 1024 * 1024  # conservative default (v7x per-TC VMEM)


def _pick_tiles(n_rows, n_cols, in_itemsize, vmem_budget_bytes):
    """Pick (row_tile, class_tile) so pipeline buffers + f32 temps fit VMEM."""
    # 2 inputs x 2 pipeline buffers at HBM dtype; charge the f32-upcast
    # temporaries only when the inputs are sub-f32.
    per_elem = 4 * in_itemsize + (8 if in_itemsize < 4 else 0)
    # Per-input block cap: DMA pipeline efficiency saturates well below this,
    # keeps VMEM headroom on 128 MiB parts and stays safe on v7x's 64 MiB.
    block_cap = 8 * 1024 * 1024

    # Guarantee >= 2 row tiles whenever N > 8 so the "parallel" row axis can
    # split across v7x's two TensorCores (harmless on single-TC v5e/v6e).
    tn_cap = min(1024, _round_up(max(pl.cdiv(n_rows, 2), 8), 8))

    cols_padded = _round_up(n_cols, 128)

    # Preferred: no class tiling (single pass per row tile).
    tn_full = min(vmem_budget_bytes // (per_elem * cols_padded),
                  block_cap // (in_itemsize * cols_padded)) // 8 * 8
    if tn_full >= min(tn_cap, 128):
        return int(min(tn_cap, tn_full)), n_cols

    # Vocab-scale C: tile the class axis, keep row tiles large for DMA eff.
    tn = min(tn_cap, 256)
    tc = min(vmem_budget_bytes // (per_elem * tn),
             block_cap // (in_itemsize * tn)) // 128 * 128
    tc = max(128, min(tc, cols_padded))
    if tc >= n_cols:
        return int(tn), n_cols
    return int(tn), int(tc)


# ------------------------------- wrapper ------------------------------------ #

def scattered_cross_entropy_loss(logits, labels, reduction="mean", *,
                                 row_tile=None, class_tile=None):
    """Pallas equivalent of ScatteredCrossEntropyLoss.forward.

    logits: (N, C) float array (float32 or bfloat16 -- prefer bf16 inputs,
            this kernel is HBM-bandwidth bound; in-kernel math is f32)
    labels: (N, C) float array of soft-label weights
    """
    N, C = logits.shape
    assert labels.shape == (N, C), (
        f"label tensor shape is {labels.shape}, "
        f"while logits tensor shape is {logits.shape}")
    assert reduction in ("none", "mean", "sum"), \
        "reduction has to be none, mean or sum"

    itemsize = jnp.dtype(logits.dtype).itemsize
    vmem_cap = _vmem_capacity_bytes()
    # Explicit scoped-VMEM limit with headroom (default is far below physical).
    vmem_limit = int(min(vmem_cap * 3 // 4, 96 * 1024 * 1024))
    # Size tiles against the actual limit minus a fixed margin for compiler
    # scratch / in-flight temporaries.
    work_budget = max(vmem_limit - 8 * 1024 * 1024, 4 * 1024 * 1024)

    tn_auto, tc_auto = _pick_tiles(N, C, itemsize, work_budget)
    tn = int(row_tile) if row_tile is not None else tn_auto
    tc = int(class_tile) if class_tile is not None else tc_auto
    if tc < C:
        assert tc % 128 == 0, "class tile must be a multiple of 128 when < C"
    assert tn % 8 == 0 or tn == N, "row tile must be a multiple of 8"

    grid = (pl.cdiv(N, tn), pl.cdiv(C, tc))
    mask_rows = (N % tn) != 0
    mask_cols = (C % tc) != 0

    kernel = functools.partial(
        _sce_rowloss_kernel,
        n_rows=N, n_cols=C, row_tile=tn, col_tile=tc,
        mask_rows=mask_rows, mask_cols=mask_cols)

    cost = pl.CostEstimate(
        flops=6 * N * C,
        transcendentals=N * C,
        bytes_accessed=2 * N * C * itemsize + 4 * N)

    losses = pl.pallas_call(
        kernel,
        out_shape=jax.ShapeDtypeStruct((N, 1), jnp.float32),
        grid_spec=pltpu.PrefetchScalarGridSpec(
            num_scalar_prefetch=0,
            grid=grid,
            in_specs=[
                pl.BlockSpec((tn, tc), lambda i, k: (i, k)),
                pl.BlockSpec((tn, tc), lambda i, k: (i, k)),
            ],
            out_specs=pl.BlockSpec((tn, 1), lambda i, k: (i, 0)),
            # Single merged accumulator: lanes [m, l, sum_y, sum_y*x, ...].
            scratch_shapes=[pltpu.VMEM((tn, 8), jnp.float32)],
        ),
        compiler_params=pltpu.CompilerParams(
            dimension_semantics=("parallel", "arbitrary"),
            vmem_limit_bytes=vmem_limit),
        cost_estimate=cost,
    )(logits, labels)

    losses = losses[:, 0]                                  # (N,)
    if reduction == "none":
        return losses
    total = jnp.sum(losses)                                # two-pass reduction
    if reduction == "mean":
        return total / N
    return total                                           # "sum"


# ------------------------------ reference ----------------------------------- #

def _reference(logits, labels, reduction="mean"):
    log_probs = jax.nn.log_softmax(logits.astype(jnp.float32), axis=1)
    losses = -jnp.sum(log_probs * labels.astype(jnp.float32), axis=1)
    if reduction == "none":
        return losses
    if reduction == "mean":
        return jnp.sum(losses) / logits.shape[0]
    return jnp.sum(losses)


# -------------------------------- main -------------------------------------- #

if __name__ == "__main__":
    root_key = jax.random.PRNGKey(0)

    def make_inputs(seed, N, C, dtype, label_scale=1.0):
        k1, k2 = jax.random.split(jax.random.fold_in(root_key, seed))
        logits = jax.random.normal(k1, (N, C), dtype=jnp.float32)
        labels = jax.nn.softmax(
            jax.random.normal(k2, (N, C), dtype=jnp.float32), axis=1)
        labels = labels * label_scale   # kernel handles arbitrary label weights
        return logits.astype(dtype), labels.astype(dtype)

    cases = [
        # name, seed, N, C, dtype, label_scale, tile overrides, rtol, atol
        ("small_f32", 0, 16, 32, jnp.float32, 1.0, {}, 1e-5, 3e-5),
        ("ragged_tiled_f32", 1, 20, 200, jnp.float32, 1.3,
         dict(row_tile=8, class_tile=128), 2e-5, 1e-4),
        ("small_bf16", 2, 16, 32, jnp.bfloat16, 1.0, {}, 1e-5, 3e-5),
    ]

    ok = True
    for name, seed, N, C, dtype, scale, tiles, rtol, atol in cases:
        logits, labels = make_inputs(seed, N, C, dtype, scale)
        for red in ("mean", "sum", "none"):
            got = jax.block_until_ready(
                scattered_cross_entropy_loss(logits, labels, reduction=red,
                                             **tiles))
            want = _reference(logits, labels, reduction=red)
            if not jnp.allclose(got, want, rtol=rtol, atol=atol):
                ok = False
                print(f"MISMATCH [{name}, reduction={red}]: {got} vs {want}")

    if ok:
        print("KERNEL_OK")
</pallas_src>

<mosaic_0001>
module attributes {stable_mosaic.version = 11 : i64} {
  func.func @_sce_rowloss_kernel(%arg0: i32, %arg1: i32, %arg2: memref<8x32xf32, #tpu.memory_space<vmem>>, %arg3: memref<8x32xf32, #tpu.memory_space<vmem>>, %arg4: memref<8x1xf32, #tpu.memory_space<vmem>>, %arg5: memref<8x8xf32, #tpu.memory_space<vmem>>) attributes {dimension_semantics = [#tpu.dimension_semantics<parallel>, #tpu.dimension_semantics<arbitrary>], iteration_bounds = array<i64: 2, 1>, scalar_prefetch = 0 : i64, scratch_operands = 1 : i64, tpu.core_type = #tpu.core_type<tc>, window_params = [{transform_indices = @transform_0, window_bounds = array<i64: 8, 32>}, {transform_indices = @transform_1, window_bounds = array<i64: 8, 32>}, {transform_indices = @transform_2, window_bounds = array<i64: 8, 1>}]} {
    %c0_i32 = arith.constant 0 : i32
    %0 = arith.cmpi eq, %arg1, %c0_i32 : i32
    %1 = arith.extui %0 : i1 to i32
    %c0_i32_0 = arith.constant 0 : i32
    %2 = arith.cmpi ne, %1, %c0_i32_0 : i32
    scf.if %2 {
      %cst_22 = arith.constant 0.000000e+00 : f32
      %35 = vector.broadcast %cst_22 : f32 to vector<8x8xf32>
      %c0_23 = arith.constant 0 : index
      %c0_24 = arith.constant 0 : index
      %36 = vector.load %arg5[%c0_23, %c0_24] : memref<8x8xf32, #tpu.memory_space<vmem>>, vector<8x8xf32>
      tpu.vector_store %arg5[%c0_23, %c0_24], %35 {strides = array<i32>} : memref<8x8xf32, #tpu.memory_space<vmem>>, vector<8x8xf32>,
      %cst_25 = arith.constant -1.000000e+30 : f32
      %37 = vector.broadcast %cst_25 : f32 to vector<8x1xf32>
      %c0_26 = arith.constant 0 : index
      %c0_27 = arith.constant 0 : index
      %38 = vector.load %arg5[%c0_26, %c0_27] : memref<8x8xf32, #tpu.memory_space<vmem>>, vector<8x1xf32>
      tpu.vector_store %arg5[%c0_26, %c0_27], %37 {strides = array<i32>} : memref<8x8xf32, #tpu.memory_space<vmem>>, vector<8x1xf32>,
    } else {
    }
    %c0 = arith.constant 0 : index
    %c0_1 = arith.constant 0 : index
    %3 = vector.load %arg2[%c0, %c0_1] : memref<8x32xf32, #tpu.memory_space<vmem>>, vector<8x32xf32>
    %c0_2 = arith.constant 0 : index
    %c0_3 = arith.constant 0 : index
    %4 = vector.load %arg3[%c0_2, %c0_3] : memref<8x32xf32, #tpu.memory_space<vmem>>, vector<8x32xf32>
    %c0_4 = arith.constant 0 : index
    %c0_5 = arith.constant 0 : index
    %5 = vector.load %arg5[%c0_4, %c0_5] : memref<8x8xf32, #tpu.memory_space<vmem>>, vector<8x1xf32>
    %cst = arith.constant dense<0xFF800000> : vector<8xf32>
    %6 = vector.multi_reduction <maximumf>, %3, %cst [1] : vector<8x32xf32> to vector<8xf32>
    %7 = vector.shape_cast %6 : vector<8xf32> to vector<8x1xf32>
    %8 = arith.maximumf %5, %7 : vector<8x1xf32>
    %9 = arith.subf %5, %8 : vector<8x1xf32>
    %10 = math.exp %9 : vector<8x1xf32>
    %c0_6 = arith.constant 0 : index
    %c1 = arith.constant 1 : index
    %11 = vector.load %arg5[%c0_6, %c1] : memref<8x8xf32, #tpu.memory_space<vmem>>, vector<8x1xf32>
    %12 = arith.mulf %10, %11 : vector<8x1xf32>
    %13 = vector.broadcast %8 : vector<8x1xf32> to vector<8x32xf32>
    %14 = arith.subf %3, %13 : vector<8x32xf32>
    %15 = math.exp %14 : vector<8x32xf32>
    %cst_7 = arith.constant dense<0.000000e+00> : vector<8xf32>
    %16 = vector.multi_reduction <add>, %15, %cst_7 [1] : vector<8x32xf32> to vector<8xf32>
    %17 = vector.shape_cast %16 : vector<8xf32> to vector<8x1xf32>
    %18 = arith.addf %12, %17 : vector<8x1xf32>
    %c0_8 = arith.constant 0 : index
    %c2 = arith.constant 2 : index
    %19 = vector.load %arg5[%c0_8, %c2] : memref<8x8xf32, #tpu.memory_space<vmem>>, vector<8x1xf32>
    %cst_9 = arith.constant dense<0.000000e+00> : vector<8xf32>
    %20 = vector.multi_reduction <add>, %4, %cst_9 [1] : vector<8x32xf32> to vector<8xf32>
    %21 = vector.shape_cast %20 : vector<8xf32> to vector<8x1xf32>
    %22 = arith.addf %19, %21 : vector<8x1xf32>
    %c0_10 = arith.constant 0 : index
    %c3 = arith.constant 3 : index
    %23 = vector.load %arg5[%c0_10, %c3] : memref<8x8xf32, #tpu.memory_space<vmem>>, vector<8x1xf32>
    %24 = arith.mulf %4, %3 : vector<8x32xf32>
    %cst_11 = arith.constant dense<0.000000e+00> : vector<8xf32>
    %25 = vector.multi_reduction <add>, %24, %cst_11 [1] : vector<8x32xf32> to vector<8xf32>
    %26 = vector.shape_cast %25 : vector<8xf32> to vector<8x1xf32>
    %27 = arith.addf %23, %26 : vector<8x1xf32>
    %c0_12 = arith.constant 0 : index
    %c0_13 = arith.constant 0 : index
    %28 = vector.load %arg5[%c0_12, %c0_13] : memref<8x8xf32, #tpu.memory_space<vmem>>, vector<8x1xf32>
    tpu.vector_store %arg5[%c0_12, %c0_13], %8 {strides = array<i32>} : memref<8x8xf32, #tpu.memory_space<vmem>>, vector<8x1xf32>,
    %c0_14 = arith.constant 0 : index
    %c1_15 = arith.constant 1 : index
    %29 = vector.load %arg5[%c0_14, %c1_15] : memref<8x8xf32, #tpu.memory_space<vmem>>, vector<8x1xf32>
    tpu.vector_store %arg5[%c0_14, %c1_15], %18 {strides = array<i32>} : memref<8x8xf32, #tpu.memory_space<vmem>>, vector<8x1xf32>,
    %c0_16 = arith.constant 0 : index
    %c2_17 = arith.constant 2 : index
    %30 = vector.load %arg5[%c0_16, %c2_17] : memref<8x8xf32, #tpu.memory_space<vmem>>, vector<8x1xf32>
    tpu.vector_store %arg5[%c0_16, %c2_17], %22 {strides = array<i32>} : memref<8x8xf32, #tpu.memory_space<vmem>>, vector<8x1xf32>,
    %c0_18 = arith.constant 0 : index
    %c3_19 = arith.constant 3 : index
    %31 = vector.load %arg5[%c0_18, %c3_19] : memref<8x8xf32, #tpu.memory_space<vmem>>, vector<8x1xf32>
    tpu.vector_store %arg5[%c0_18, %c3_19], %27 {strides = array<i32>} : memref<8x8xf32, #tpu.memory_space<vmem>>, vector<8x1xf32>,
    %c0_i32_20 = arith.constant 0 : i32
    %32 = arith.cmpi eq, %arg1, %c0_i32_20 : i32
    %33 = arith.extui %32 : i1 to i32
    %c0_i32_21 = arith.constant 0 : i32
    %34 = arith.cmpi ne, %33, %c0_i32_21 : i32
    scf.if %34 {
      %c0_22 = arith.constant 0 : index
      %c0_23 = arith.constant 0 : index
      %35 = vector.load %arg5[%c0_22, %c0_23] : memref<8x8xf32, #tpu.memory_space<vmem>>, vector<8x1xf32>
      %c0_24 = arith.constant 0 : index
      %c1_25 = arith.constant 1 : index
      %36 = vector.load %arg5[%c0_24, %c1_25] : memref<8x8xf32, #tpu.memory_space<vmem>>, vector<8x1xf32>
      %37 = math.log %36 : vector<8x1xf32>
      %38 = arith.addf %35, %37 : vector<8x1xf32>
      %c0_26 = arith.constant 0 : index
      %c2_27 = arith.constant 2 : index
      %39 = vector.load %arg5[%c0_26, %c2_27] : memref<8x8xf32, #tpu.memory_space<vmem>>, vector<8x1xf32>
      %40 = arith.mulf %38, %39 : vector<8x1xf32>
      %c0_28 = arith.constant 0 : index
      %c3_29 = arith.constant 3 : index
      %41 = vector.load %arg5[%c0_28, %c3_29] : memref<8x8xf32, #tpu.memory_space<vmem>>, vector<8x1xf32>
      %42 = arith.subf %40, %41 : vector<8x1xf32>
      %c0_30 = arith.constant 0 : index
      %c0_31 = arith.constant 0 : index
      %43 = vector.load %arg4[%c0_30, %c0_31] : memref<8x1xf32, #tpu.memory_space<vmem>>, vector<8x1xf32>
      tpu.vector_store %arg4[%c0_30, %c0_31], %42 {strides = array<i32>} : memref<8x1xf32, #tpu.memory_space<vmem>>, vector<8x1xf32>,
    } else {
    }
    return
  }
  func.func @transform_0(%arg0: i32, %arg1: i32) -> (i32, i32) {
    %c0_i32 = arith.constant 0 : i32
    return %arg0, %arg1 : i32, i32
  }
  func.func @transform_1(%arg0: i32, %arg1: i32) -> (i32, i32) {
    %c0_i32 = arith.constant 0 : i32
    return %arg0, %arg1 : i32, i32
  }
  func.func @transform_2(%arg0: i32, %arg1: i32) -> (i32, i32) {
    %c0_i32 = arith.constant 0 : i32
    %c0_i32_0 = arith.constant 0 : i32
    return %arg0, %c0_i32 : i32, i32
  }
}

</mosaic_0001>

<llo_original>
// kernel: tpu_custom_call.1
$region0: #{tpu_custom_call.1}
  #allocation0 [shape = 'u32[]', space=smem, size = 0x4, offset = 0x4, fixed_abs, tag = 'smem constant byte address 0x4 - core index']
  #allocation1 [shape = 'u32[144,128]{1,0:T(1,128)}', space=vmem, size = 0x12000, scoped, tag = 'internal scratch']
  #allocation2 [shape = 'f32[8,8]{1,0:T(8,128)}', space=vmem, size = 0x1000, scoped, tag = 'scratch operand']
  %s0 = inlined_call_operand.hbm [shape: f32[16,32], index: 0, kind: input, shape index: {}]
  %s1 = inlined_call_operand.hbm [shape: f32[16,32], index: 1, kind: input, shape index: {}]
  %s2 = inlined_call_operand.vmem [shape: f32[16,1], index: 2, kind: output, shape index: {}]
  %s3 = sld [smem:[#allocation0]]
  $region57: #{tpu_custom_call.1} parent=0
    _
  %s5 = ssub.s32 1, %s3
  %s6 = scalar_select 0, %s5, %s3
  $region1: #{tpu_custom_call.1} parent=0
    #allocation3 [shape = 'u8[8192]{0}', space=vmem, size = 0x2000, scoped, tag = 'input window, operand 0']
    #allocation4 [shape = 's32[2]{0}', space=sflag, size = 0x8, scoped, tag = 'scoped memory for tpu_custom_call.1']
    #allocation5 [shape = 'u8[8192]{0}', space=vmem, size = 0x2000, scoped, tag = 'input window, operand 1']
    #allocation6 [shape = 's32[2]{0}', space=sflag, size = 0x8, scoped, tag = 'scoped memory for tpu_custom_call.1']
    %7 = vsyncpa [#allocation4], 0
    %s8 = scalar_lea.sflag [#allocation4], 1
    %9 = vsyncpa %s8, 0
    %10 = vsyncpa [#allocation6], 0
    %s11 = scalar_lea.sflag [#allocation6], 1
    %12 = vsyncpa %s11, 0
    loop: start=0, step=1, limit=4
    $region2: #{tpu_custom_call.1} parent=1 // loop_pre_header
      _
    $region3: #{tpu_custom_call.1} parent=1 // loop_header
      %s14 = sphi 0, %s18
      %p15 = scmp.ge.s32.totalorder %s14, 4
      %s21 = sphi 0, %s33
      %s22 = sphi 0, %s29
      %s23 = sphi 0, %s21
      %s24 = sphi 0, %s22
      %s25 = sphi 0, %s23
      %s26 = sphi 0, %s24
      %s38 = sphi 0, %s40
      %s41 = sphi 0, %s38
      %s42 = sphi 0, %s41
      %s58 = sphi 0, %s42
      %s66 = sphi 0, %s68
      %s69 = sphi 0, %s66
      %s70 = sphi 0, %s69
      %s86 = sphi 0, %s70
      %s92 = sphi 0, %s94
      %s95 = sphi 0, %s92
      %s96 = sphi 0, %s95
      %s112 = sphi 0, %s96
    $region4: #{tpu_custom_call.1} parent=1 // loop_header_branch
      %17 = sbr.rel (%p15) target = $region8
    $region5: #{tpu_custom_call.1} parent=1 // loop_body
      %s19 = ssub.s32 %s14, 1
      %s20 = ssub.s32 %s14, 2
      %s27 = sadd.s32 1, %s22
      %p28 = scmp.ge.s32.totalorder %s27, 1
      %s29 = scalar_select %p28, 0, %s27
      %s30 = sadd.s32 1, %s21
      %s31 = scalar_select %p28, %s30, %s21
      %p32 = scmp.ge.s32.totalorder %s31, 2
      %s33 = scalar_select %p32, 0, %s31
      %s34 = ssub.s32 %s21, %s33
      %s35 = ssub.s32 %s22, %s29
      %s36 = sor.u32 %s34, %s35
      %p37 = scmp.eq.s32.totalorder %s36, 0
      %s39 = sadd.s32 %s38, 1
      %s40 = scalar_select %p37, %s38, %s39
      %p43 = pneg %p37
      %p44 = scmp.eq.s32.totalorder %s14, 1
      %p45 = por %p43, %p44
      %p46 = scmp.ne.s32.totalorder %s38, %s41
      %p47 = scmp.eq.s32.totalorder %s14, 0
      %p48 = por %p46, %p47
      %p49 = scmp.ne.s32.totalorder %s38, %s41
      %p50 = scmp.eq.s32.totalorder %s19, 1
      %p51 = por %p49, %p50
      %p52 = scmp.ne.s32.totalorder %s41, %s42
      %p53 = scmp.eq.s32.totalorder %s19, 0
      %p54 = por %p52, %p53
      %p55 = scmp.ne.s32.totalorder %s41, %s42
      %p56 = scmp.eq.s32.totalorder %s20, 1
      %p57 = por %p55, %p56
      %p59 = scmp.ne.s32.totalorder %s42, %s58
      %p60 = scmp.eq.s32.totalorder %s20, 0
      %p61 = por %p59, %p60
      %s62 = ssub.s32 %s21, %s33
      %s63 = ssub.s32 %s22, %s29
      %s64 = sor.u32 %s62, %s63
      %p65 = scmp.eq.s32.totalorder %s64, 0
      %s67 = sadd.s32 %s66, 1
      %s68 = scalar_select %p65, %s66, %s67
      %p71 = pneg %p65
      %p72 = scmp.eq.s32.totalorder %s14, 1
      %p73 = por %p71, %p72
      %p74 = scmp.ne.s32.totalorder %s66, %s69
      %p75 = scmp.eq.s32.totalorder %s14, 0
      %p76 = por %p74, %p75
      %p77 = scmp.ne.s32.totalorder %s66, %s69
      %p78 = scmp.eq.s32.totalorder %s19, 1
      %p79 = por %p77, %p78
      %p80 = scmp.ne.s32.totalorder %s69, %s70
      %p81 = scmp.eq.s32.totalorder %s19, 0
      %p82 = por %p80, %p81
      %p83 = scmp.ne.s32.totalorder %s69, %s70
      %p84 = scmp.eq.s32.totalorder %s20, 1
      %p85 = por %p83, %p84
      %p87 = scmp.ne.s32.totalorder %s70, %s86
      %p88 = scmp.eq.s32.totalorder %s20, 0
      %p89 = por %p87, %p88
      %s90 = ssub.s32 %s21, %s33
      %p91 = scmp.eq.s32.totalorder %s90, 0
      %s93 = sadd.s32 %s92, 1
      %s94 = scalar_select %p91, %s92, %s93
      %p97 = pneg %p91
      %p98 = scmp.eq.s32.totalorder %s14, 1
      %p99 = por %p97, %p98
      %p100 = scmp.ne.s32.totalorder %s92, %s95
      %p101 = scmp.eq.s32.totalorder %s14, 0
      %p102 = por %p100, %p101
      %p103 = scmp.ne.s32.totalorder %s92, %s95
      %p104 = scmp.eq.s32.totalorder %s19, 1
      %p105 = por %p103, %p104
      %p106 = scmp.ne.s32.totalorder %s95, %s96
      %p107 = scmp.eq.s32.totalorder %s19, 0
      %p108 = por %p106, %p107
      %p109 = scmp.ne.s32.totalorder %s95, %s96
      %p110 = scmp.eq.s32.totalorder %s20, 1
      %p111 = por %p109, %p110
      %p113 = scmp.ne.s32.totalorder %s96, %s112
      %p114 = scmp.eq.s32.totalorder %s20, 0
      %p115 = por %p113, %p114
      %p116 = scmp.le.s32.totalorder 1, %s14
      %p117 = scmp.lt.s32.totalorder %s14, 3
      %p118 = pnand %p116, %p117
      %p119 = pneg %p118
      // Predicated region
      $region9: #{tpu_custom_call.1} parent=5 // pred_check
        _
      $region10: #{tpu_custom_call.1} parent=5 // pred_check_branch
        %121 = sbr.rel (%p118) target = $region12
      $region11: #{tpu_custom_call.1} parent=5 // pred_region
        %s122 = ssub.s32 %s14, 1
      $region12: #{tpu_custom_call.1} parent=5 // pred_fallthru
        _
      %p123 = scmp.lt.s32.totalorder %s14, 2
      // Predicated region
      $region13: #{tpu_custom_call.1} parent=5 // pred_check
        %p124 = pneg %p123
      $region14: #{tpu_custom_call.1} parent=5 // pred_check_branch
        %126 = sbr.rel (%p124) target = $region16
      $region15: #{tpu_custom_call.1} parent=5 // pred_region
        // Predicated region
        $region17: #{tpu_custom_call.1} parent=15 // pred_check
          %p127 = pneg %p48
        $region18: #{tpu_custom_call.1} parent=15 // pred_check_branch
          %129 = sbr.rel (%p127) target = $region20
        $region19: #{tpu_custom_call.1} parent=15 // pred_region
          %s130 = sand.u32 %s38, 1
          %s131 = scalar_lea.sflag [#allocation4], %s130
          %s132 = sand.u32 %s38, 1
          %s133 = smul.addr %s132, 8
          %s134 = scalar_lea.vmem [#allocation3], %s133
          %s136 = ssub.s32 128, 128
          %137 = vsyncadd %s131, %s136
          %s138 = sadd.s32 %s22, %s21
          %s139 = smul.addr %s138, 128
          %s140 = scalar_lea.hbm %s0, %s139
          %s142 = sshll.u32 %s134, 4
          %s143 = int_to_ptr.vmem [resolvable:$true] %s142
          %145 = dma.hbm_to_vmem [thread:$0]  %s140, 128, %s143, %s131
        $region20: #{tpu_custom_call.1} parent=15 // pred_fallthru
          _
        // Predicated region
        $region21: #{tpu_custom_call.1} parent=15 // pred_check
          %p146 = pneg %p76
        $region22: #{tpu_custom_call.1} parent=15 // pred_check_branch
          %148 = sbr.rel (%p146) target = $region24
        $region23: #{tpu_custom_call.1} parent=15 // pred_region
          %s149 = sand.u32 %s66, 1
          %s150 = scalar_lea.sflag [#allocation6], %s149
          %s151 = sand.u32 %s66, 1
          %s152 = smul.addr %s151, 8
          %s153 = scalar_lea.vmem [#allocation5], %s152
          %s155 = ssub.s32 128, 128
          %156 = vsyncadd %s150, %s155
          %s157 = sadd.s32 %s22, %s21
          %s158 = smul.addr %s157, 128
          %s159 = scalar_lea.hbm %s1, %s158
          %s161 = sshll.u32 %s153, 4
          %s162 = int_to_ptr.vmem [resolvable:$true] %s161
          %164 = dma.hbm_to_vmem [thread:$0]  %s159, 128, %s162, %s150
        $region24: #{tpu_custom_call.1} parent=15 // pred_fallthru
          _
      $region16: #{tpu_custom_call.1} parent=5 // pred_fallthru
        _
      %p165 = scmp.le.s32.totalorder 1, %s14
      %p166 = scmp.lt.s32.totalorder %s14, 3
      %p167 = pnand %p165, %p166
      %p168 = pneg %p167
      // Predicated region
      $region25: #{tpu_custom_call.1} parent=5 // pred_check
        _
      $region26: #{tpu_custom_call.1} parent=5 // pred_check_branch
        %170 = sbr.rel (%p167) target = $region28
      $region27: #{tpu_custom_call.1} parent=5 // pred_region
        %s171 = ssub.s32 %s14, 1
        %s172 = sand.u32 %s41, 1
        %s173 = scalar_lea.sflag [#allocation4], %s172
        %s174 = sand.u32 %s41, 1
        %s175 = smul.addr %s174, 8
        %s176 = scalar_lea.vmem [#allocation3], %s175
        // Predicated region
        $region29: #{tpu_custom_call.1} parent=27 // pred_check
          %p177 = pneg %p54
        $region30: #{tpu_custom_call.1} parent=27 // pred_check_branch
          %179 = sbr.rel (%p177) target = $region32
        $region31: #{tpu_custom_call.1} parent=27 // pred_region
          %180 = dma.done %s173, 128
        $region32: #{tpu_custom_call.1} parent=27 // pred_fallthru
          _
        %s181 = sand.u32 %s69, 1
        %s182 = scalar_lea.sflag [#allocation6], %s181
        %s183 = sand.u32 %s69, 1
        %s184 = smul.addr %s183, 8
        %s185 = scalar_lea.vmem [#allocation5], %s184
        // Predicated region
        $region33: #{tpu_custom_call.1} parent=27 // pred_check
          %p186 = pneg %p82
        $region34: #{tpu_custom_call.1} parent=27 // pred_check_branch
          %188 = sbr.rel (%p186) target = $region36
        $region35: #{tpu_custom_call.1} parent=27 // pred_region
          %189 = dma.done %s182, 128
        $region36: #{tpu_custom_call.1} parent=27 // pred_fallthru
          _
        %s190 = sand.u32 %s41, 1
        %s191 = scalar_lea.sflag [#allocation4], %s190
        %s192 = sand.u32 %s41, 1
        %s193 = smul.addr %s192, 8
        %s194 = scalar_lea.vmem [#allocation3], %s193
        %p195 = pneg %p54
        %p196 = pneg %p51
        %s197 = sand.u32 %s69, 1
        %s198 = scalar_lea.sflag [#allocation6], %s197
        %s199 = sand.u32 %s69, 1
        %s200 = smul.addr %s199, 8
        %s201 = scalar_lea.vmem [#allocation5], %s200
        %p202 = pneg %p82
        %p203 = pneg %p79
        %p204 = pneg %p108
        %p205 = pneg %p105
        %p206 = scmp.lt.s32.totalorder %s23, 1
        %s207 = scalar_select %p206, %s23, 1
        %s208 = smul.addr %s207, 8
        %s209 = scalar_lea.vmem %s2, %s208
        %p210 = scmp.lt.s32.totalorder %s23, 1
        %s211 = scalar_select %p210, %s23, 1
        %s212 = smul.addr %s211, 8
        %s213 = scalar_lea.vmem %s2, %s212
        %p214 = scmp.eq.s32.totalorder %s24, 0
        // Predicated region
        $region37: #{tpu_custom_call.1} parent=27 // pred_check
          %p215 = pneg %p214
        $region38: #{tpu_custom_call.1} parent=27 // pred_check_branch
          %217 = sbr.rel (%p215) target = $region40
        $region39: #{tpu_custom_call.1} parent=27 // pred_region
          %vm218 = vcmask 64512
          %219 = vst.msk [vmem:[#allocation2] sm:$0xff] %vm218, 0.0
          %vm220 = vcmask 7168
          %221 = vst.msk [vmem:[#allocation2] sm:$0xff] %vm220, -1e+30
        $region40: #{tpu_custom_call.1} parent=27 // pred_fallthru
          _
        %v222 = vld [vmem:[%s176] sm:$0xff]
        %v223 = vld [vmem:[%s185] sm:$0xff]
        %v224 = vld [vmem:[#allocation2] sm:$0xff]
        %vm225 = vcmask 261120
        %v226 = vsel %vm225, %v222, -inf
        %227 = vmax.xlane.f32.xlu0 %v226
        %v228 = vpop.xlane.xlu0 %227
        %v229 = vmax.f32 %v224, %v228
        %v230 = vsub.f32 %v224, %v229
        %v231 = vmul.f32 %v230, 1.442695
        %v232 = vpow.pop %v231
        %234 = vrot.lane.b32.xlu0 %v224, 127
        %v235 = vpop.permute.xlu0 %234
        %v237 = vmul.f32 %v232, %v235
        %239 = vset.pattern.permute.xlu0 0
        %240 = vperm.xlu0 %239, %v229
        %v241 = vpop.permute.xlu0 %240
        %v243 = vsub.f32 %v222, %v241
        %v244 = vmul.f32 %v243, 1.442695
        %v245 = vpow.pop %v244
        %v246 = vsel %vm225, %v245, 0.0
        %247 = vadd.xlane.f32.xlu0 %v246
        %v248 = vpop.xlane.xlu0 %247
        %v249 = vadd.f32 %v237, %v248
        %v250 = vsel %vm225, %v223, 0.0
        %251 = vadd.xlane.f32.xlu0 %v250
        %v252 = vpop.xlane.xlu0 %251
        %v253 = vadd.f32 %v224, %v252
        %v254 = vmul.f32 %v223, %v222
        %v255 = vsel %vm225, %v254, 0.0
        %256 = vadd.xlane.f32.xlu0 %v255
        %v257 = vpop.xlane.xlu0 %256
        %v258 = vadd.f32 %v224, %v257
        %vm259 = vcmask 7168
        %260 = vst.msk [vmem:[#allocation2] sm:$0xff] %vm259, %v229
        %262 = vrot.lane.b32.xlu0 %v249, 1
        %v263 = vpop.permute.xlu0 %262
        %vm265 = vcmask 15368
        %266 = vst.msk [vmem:[#allocation2] sm:$0xff] %vm265, %v263
        %vm267 = vcmask 23568
        %268 = vst.msk [vmem:[#allocation2] sm:$0xff] %vm267, %v253
        %vm269 = vcmask 31768
        %270 = vst.msk [vmem:[#allocation2] sm:$0xff] %vm269, %v258
        // Predicated region
        $region41: #{tpu_custom_call.1} parent=27 // pred_check
          %p271 = pneg %p214
        $region42: #{tpu_custom_call.1} parent=27 // pred_check_branch
          %273 = sbr.rel (%p271) target = $region44
        $region43: #{tpu_custom_call.1} parent=27 // pred_region
          %v274 = vld [vmem:[#allocation2] sm:$0xff]
          %v275 = vlog2.pop %v274
          %v276 = vmul.f32 %v275, 0.6931472
          %278 = vrot.lane.b32.xlu0 %v276, 127
          %v279 = vpop.permute.xlu0 %278
          %v281 = vadd.f32 %v274, %v279
          %283 = vrot.lane.b32.xlu0 %v274, 126
          %v284 = vpop.permute.xlu0 %283
          %v286 = vmul.f32 %v281, %v284
          %287 = vrot.lane.b32.xlu0 %v274, 125
          %v288 = vpop.permute.xlu0 %287
          %v290 = vsub.f32 %v286, %v288
          %291 = vst.msk [vmem:[%s213] sm:$0xff] %vm259, %v290
        $region44: #{tpu_custom_call.1} parent=27 // pred_fallthru
          _
        %p292 = scmp.lt.s32.totalorder %s23, 1
        %s293 = scalar_select %p292, %s23, 1
        %s294 = smul.addr %s293, 8
        %s295 = scalar_lea.vmem %s2, %s294
        // Predicated region
        $region45: #{tpu_custom_call.1} parent=27 // pred_check
          %p296 = pneg %p105
        $region46: #{tpu_custom_call.1} parent=27 // pred_check_branch
          %298 = sbr.rel (%p296) target = $region48
        $region47: #{tpu_custom_call.1} parent=27 // pred_region
          _
        $region48: #{tpu_custom_call.1} parent=27 // pred_fallthru
          _
      $region28: #{tpu_custom_call.1} parent=5 // pred_fallthru
        _
      %p299 = scmp.le.s32.totalorder 2, %s14
      // Predicated region
      $region49: #{tpu_custom_call.1} parent=5 // pred_check
        %p300 = pneg %p299
      $region50: #{tpu_custom_call.1} parent=5 // pred_check_branch
        %302 = sbr.rel (%p300) target = $region52
      $region51: #{tpu_custom_call.1} parent=5 // pred_region
        %s303 = ssub.s32 %s14, 2
        // Predicated region
        $region53: #{tpu_custom_call.1} parent=51 // pred_check
          %p304 = pneg %p111
        $region54: #{tpu_custom_call.1} parent=51 // pred_check_branch
          %306 = sbr.rel (%p304) target = $region56
        $region55: #{tpu_custom_call.1} parent=51 // pred_region
          %p307 = scmp.lt.s32.totalorder %s25, 1
          %s308 = scalar_select %p307, %s25, 1
          %s309 = smul.addr %s308, 8
          %s310 = scalar_lea.vmem %s2, %s309
        $region56: #{tpu_custom_call.1} parent=51 // pred_fallthru
          _
      $region52: #{tpu_custom_call.1} parent=5 // pred_fallthru
        _
    $region6: #{tpu_custom_call.1} parent=1 // loop_footer
      %s18 = sadd.s32 1, %s14
    $region7: #{tpu_custom_call.1} parent=1 // loop_footer_branch
      %13 = sbr.rel target = $region3
    $region8: #{tpu_custom_call.1} parent=1 // loop_exit
      _
    %311 = vsyncpa [#allocation4], 1
    %s312 = scalar_lea.sflag [#allocation4], 1
    %313 = vsyncpa %s312, 1
    %314 = vsyncpa [#allocation6], 1
    %s315 = scalar_lea.sflag [#allocation6], 1
    %316 = vsyncpa %s315, 1

</llo_original>
